<compile_context>
chip_gen: v6e
topology: v6e:2x2x1
jax: 0.10.0
libtpu: 0.0.40
codegen_flags: <defaults>
</compile_context>

<pallas_src>
import jax
import jax.numpy as jnp
from jax.experimental import pallas as pl
from jax.experimental.pallas import tpu as pltpu

HIDDEN_NODES = [8, 4, 2]
OUTPUT_NODES = 1
BN_EPS = 1e-5


def _cdiv(a, b):
    return -(-a // b)


def _round_up(a, b):
    return _cdiv(a, b) * b


def _block_diag(w, pack):
    """(i, o) weight -> (pack*i, pack*o) block-diagonal weight (trace time)."""
    if pack == 1:
        return w
    i, o = w.shape
    eye = jnp.eye(pack, dtype=w.dtype)
    blocks = eye[:, :, None, None] * w[None, None, :, :]      # (p, p, i, o)
    return blocks.transpose(0, 2, 1, 3).reshape(pack * i, pack * o)


def _tile_bias(b, pack):
    """(o,) bias -> (1, pack*o) row; broadcasts over sublanes in the kernel."""
    return jnp.tile(b, pack).reshape(1, pack * b.shape[0])


def _mlp_kernel(x_ref, w1_ref, b1_ref, w2_ref, b2_ref, w3_ref, b3_ref,
                wo_ref, bo_ref, out_ref):
    """One batch tile in 'packed' layout: each sublane row holds `pack`
    consecutive batch rows; weights are block-diagonal so every matmul is a
    native (m, k) @ (k, n) MXU op (no transposes, no relayouts)."""
    x = x_ref[...].astype(jnp.float32)

    h = jnp.dot(x, w1_ref[...], preferred_element_type=jnp.float32)
    h = jnp.maximum(h + b1_ref[...], 0.0)                     # Linear+ReLU (+Dropout=id)

    h = jnp.dot(h, w2_ref[...], preferred_element_type=jnp.float32)
    h = jnp.maximum(h + b2_ref[...], 0.0)

    h = jnp.dot(h, w3_ref[...], preferred_element_type=jnp.float32)
    h = jnp.maximum(h + b3_ref[...], 0.0)

    # BatchNorm (eval) is pre-folded into wo/bo; final Linear (block-diag).
    out_ref[...] = (jnp.dot(h, wo_ref[...], preferred_element_type=jnp.float32)
                    + bo_ref[0, 0])


def model_two_forward(x, params, *, vmem_budget_bytes=24 << 20, min_tiles=8,
                      max_tile_rows=1 << 17):
    """x: (B, input_size).  Returns (B, 1) f32 (eval-mode forward)."""
    B, F = x.shape
    (w1, b1, w2, b2, w3, b3, gamma, beta, r_mean, r_var, wo, bo) = params

    # ---- fold eval-mode BatchNorm1d into the output Linear ----------------
    inv_std = 1.0 / jnp.sqrt(r_var + BN_EPS)
    bn_scale = gamma * inv_std                       # (2,)
    bn_shift = beta - r_mean * bn_scale              # (2,)
    wo_f = wo * bn_scale[:, None]                    # (2, 1)
    bo_f = (bn_shift @ wo + bo).reshape(1, 1)        # (1, 1) scalar via SMEM

    # ---- lane packing: fold `pack` consecutive batch rows per 128-lane row
    pack = 128 // F if (F <= 128 and 128 % F == 0) else 1
    xp_cols = F * pack

    w1p = _block_diag(w1, pack)
    w2p = _block_diag(w2, pack)
    w3p = _block_diag(w3, pack)
    wop = _block_diag(wo_f, pack)
    b1p = _tile_bias(b1, pack)
    b2p = _tile_bias(b2, pack)
    b3p = _tile_bias(b3, pack)

    # ---- batch tile selection (VMEM-budget driven, generation-safe) -------
    granule = 8 * pack                               # (8,128) block divisibility
    itemsize = jnp.dtype(x.dtype).itemsize
    x_row_bytes = _round_up(xp_cols, 128) * itemsize          # per packed row
    out_row_bytes = _round_up(pack, 128) * 4                  # per packed row
    per_packed_row = 2 * (x_row_bytes + out_row_bytes)        # double-buffered

    rows_packed = max(1, vmem_budget_bytes // per_packed_row)
    tb_budget = min(rows_packed * pack, max_tile_rows)
    tb_budget = max(granule, (tb_budget // granule) * granule)
    # Keep >= min_tiles grid steps for large B (v7x megacore + pipelining).
    tb_work = _round_up(_cdiv(B, min_tiles), granule)
    tb = max(granule, min(tb_budget, tb_work))

    n_tiles = _cdiv(B, tb)
    b_pad = n_tiles * tb
    if b_pad != B:
        x = jnp.pad(x, ((0, b_pad - B), (0, 0)))
    xp = x.reshape(b_pad // pack, xp_cols)           # row-major repack

    x_blk = (tb // pack, xp_cols)
    out_blk = (tb // pack, pack)

    blk_bytes = (tb // pack) * (x_row_bytes + out_row_bytes)
    vmem_limit = int(min(max(2 * blk_bytes + (4 << 20), 8 << 20), 64 << 20))

    def resident(shape):
        # Constant index_map -> operand stays VMEM-resident across grid steps.
        return pl.BlockSpec(shape, lambda i: (0, 0))

    out = pl.pallas_call(
        _mlp_kernel,
        out_shape=jax.ShapeDtypeStruct((b_pad // pack, pack), jnp.float32),
        grid=(n_tiles,),
        in_specs=[
            pl.BlockSpec(x_blk, lambda i: (i, 0)),           # pipelined x tiles
            resident(w1p.shape), resident(b1p.shape),
            resident(w2p.shape), resident(b2p.shape),
            resident(w3p.shape), resident(b3p.shape),
            resident(wop.shape),
            pl.BlockSpec(memory_space=pltpu.MemorySpace.SMEM),  # bo scalar
        ],
        out_specs=pl.BlockSpec(out_blk, lambda i: (i, 0)),
        compiler_params=pltpu.CompilerParams(
            dimension_semantics=("parallel",),
            vmem_limit_bytes=vmem_limit),
    )(xp, w1p, b1p, w2p, b2p, w3p, b3p, wop, bo_f)

    # Packed output row r holds batch rows r*pack .. r*pack+pack-1 (row-major),
    # so this reshape recovers the (B, 1) layout; padded tail rows dropped.
    return out.reshape(b_pad, 1)[:B]


def init_params(key, input_size):
    """Deterministic init matching the PyTorch layer shapes.

    Linear weights are stored as (in_features, out_features)."""
    dims = [input_size] + HIDDEN_NODES
    keys = jax.random.split(key, 8)
    params = []
    for i in range(3):
        fan_in = dims[i]
        k = 1.0 / jnp.sqrt(jnp.float32(fan_in))
        w = jax.random.uniform(keys[2 * i], (dims[i], dims[i + 1]),
                               jnp.float32, -k, k)
        b = jax.random.uniform(keys[2 * i + 1], (dims[i + 1],),
                               jnp.float32, -k, k)
        params += [w, b]

    # BatchNorm1d(2) parameters / running stats (fresh init).
    c = HIDDEN_NODES[-1]
    params += [jnp.ones((c,), jnp.float32),    # gamma
               jnp.zeros((c,), jnp.float32),   # beta
               jnp.zeros((c,), jnp.float32),   # running_mean
               jnp.ones((c,), jnp.float32)]    # running_var

    # Output Linear(2, 1).
    k = 1.0 / jnp.sqrt(jnp.float32(c))
    wo = jax.random.uniform(keys[6], (c, OUTPUT_NODES), jnp.float32, -k, k)
    bo = jax.random.uniform(keys[7], (OUTPUT_NODES,), jnp.float32, -k, k)
    params += [wo, bo]
    return tuple(params)


def reference_forward(x, params):
    """Pure-JAX reference (eval-mode semantics) for correctness checking."""
    (w1, b1, w2, b2, w3, b3, gamma, beta, r_mean, r_var, wo, bo) = params
    h = jnp.maximum(x @ w1 + b1, 0.0)
    h = jnp.maximum(h @ w2 + b2, 0.0)
    h = jnp.maximum(h @ w3 + b3, 0.0)
    h = (h - r_mean) / jnp.sqrt(r_var + BN_EPS) * gamma + beta
    return h @ wo + bo


if __name__ == "__main__":
    key = jax.random.PRNGKey(0)
    k_param, k_x = jax.random.split(key)

    # Case 1: F=32 (packed path, pack=4), multi-tile grid with padded tail.
    input_size = 32
    params = init_params(k_param, input_size)
    x = jax.random.normal(k_x, (300, input_size), jnp.float32)
    out = jax.block_until_ready(model_two_forward(x, params))
    ref = reference_forward(x, params)
    assert out.shape == (300, OUTPUT_NODES)
    assert jnp.allclose(out, ref, atol=1e-5, rtol=1e-5), "mismatch (F=32 multi-tile)"

    # Case 2: exact-fit small batch (no tail padding), packed path.
    x2 = jax.random.normal(jax.random.PRNGKey(1), (64, input_size), jnp.float32)
    out2 = jax.block_until_ready(model_two_forward(x2, params))
    ref2 = reference_forward(x2, params)
    assert out2.shape == (64, OUTPUT_NODES)
    assert jnp.allclose(out2, ref2, atol=1e-5, rtol=1e-5), "mismatch (F=32 exact)"

    # Case 3: F=48 (128 % F != 0 -> fallback unpacked path).
    params3 = init_params(jax.random.PRNGKey(2), 48)
    x3 = jax.random.normal(jax.random.PRNGKey(3), (200, 48), jnp.float32)
    out3 = jax.block_until_ready(model_two_forward(x3, params3))
    ref3 = reference_forward(x3, params3)
    assert out3.shape == (200, OUTPUT_NODES)
    assert jnp.allclose(out3, ref3, atol=1e-5, rtol=1e-5), "mismatch (F=48 fallback)"

    print("KERNEL_OK")
</pallas_src>

<mosaic_0001>
module attributes {stable_mosaic.version = 11 : i64} {
  func.func @_mlp_kernel(%arg0: i32, %arg1: memref<16x128xf32, #tpu.memory_space<vmem>>, %arg2: memref<128x32xf32, #tpu.memory_space<vmem>>, %arg3: memref<1x32xf32, #tpu.memory_space<vmem>>, %arg4: memref<32x16xf32, #tpu.memory_space<vmem>>, %arg5: memref<1x16xf32, #tpu.memory_space<vmem>>, %arg6: memref<16x8xf32, #tpu.memory_space<vmem>>, %arg7: memref<1x8xf32, #tpu.memory_space<vmem>>, %arg8: memref<8x4xf32, #tpu.memory_space<vmem>>, %arg9: memref<1x1xf32, #tpu.memory_space<smem>>, %arg10: memref<16x4xf32, #tpu.memory_space<vmem>>) attributes {dimension_semantics = [#tpu.dimension_semantics<parallel>], iteration_bounds = array<i64: 5>, scalar_prefetch = 0 : i64, scratch_operands = 0 : i64, tpu.core_type = #tpu.core_type<tc>, window_params = [{transform_indices = @transform_0, window_bounds = array<i64: 16, 128>}, {pipeline_mode = #tpu.pipeline_mode<synchronous>, transform_indices = @transform_1, window_bounds = array<i64: 128, 32>}, {pipeline_mode = #tpu.pipeline_mode<synchronous>, transform_indices = @transform_2, window_bounds = array<i64: 1, 32>}, {pipeline_mode = #tpu.pipeline_mode<synchronous>, transform_indices = @transform_3, window_bounds = array<i64: 32, 16>}, {pipeline_mode = #tpu.pipeline_mode<synchronous>, transform_indices = @transform_4, window_bounds = array<i64: 1, 16>}, {pipeline_mode = #tpu.pipeline_mode<synchronous>, transform_indices = @transform_5, window_bounds = array<i64: 16, 8>}, {pipeline_mode = #tpu.pipeline_mode<synchronous>, transform_indices = @transform_6, window_bounds = array<i64: 1, 8>}, {pipeline_mode = #tpu.pipeline_mode<synchronous>, transform_indices = @transform_7, window_bounds = array<i64: 8, 4>}, {transform_indices = @transform_8, window_bounds = array<i64: 1, 1>}, {transform_indices = @transform_9, window_bounds = array<i64: 16, 4>}]} {
    %c0 = arith.constant 0 : index
    %c0_0 = arith.constant 0 : index
    %0 = vector.load %arg1[%c0, %c0_0] : memref<16x128xf32, #tpu.memory_space<vmem>>, vector<16x128xf32>
    %c0_1 = arith.constant 0 : index
    %c0_2 = arith.constant 0 : index
    %1 = vector.load %arg2[%c0_1, %c0_2] : memref<128x32xf32, #tpu.memory_space<vmem>>, vector<128x32xf32>
    %cst = arith.constant dense<0.000000e+00> : vector<16x32xf32>
    %2 = tpu.matmul %0, %1, %cst {dimension_numbers = #tpu.dot_dimension_numbers<[1], [0], [0], [1], [0, 0, 1, 1], [], []>} : vector<16x128xf32>, vector<128x32xf32>, vector<16x32xf32> -> vector<16x32xf32>
    %c0_3 = arith.constant 0 : index
    %c0_4 = arith.constant 0 : index
    %3 = vector.load %arg3[%c0_3, %c0_4] : memref<1x32xf32, #tpu.memory_space<vmem>>, vector<1x32xf32>
    %4 = vector.broadcast %3 : vector<1x32xf32> to vector<16x32xf32>
    %5 = arith.addf %2, %4 : vector<16x32xf32>
    %cst_5 = arith.constant 0.000000e+00 : f32
    %6 = vector.broadcast %cst_5 : f32 to vector<16x32xf32>
    %7 = arith.maximumf %5, %6 : vector<16x32xf32>
    %c0_6 = arith.constant 0 : index
    %c0_7 = arith.constant 0 : index
    %8 = vector.load %arg4[%c0_6, %c0_7] : memref<32x16xf32, #tpu.memory_space<vmem>>, vector<32x16xf32>
    %cst_8 = arith.constant dense<0.000000e+00> : vector<16x16xf32>
    %9 = tpu.matmul %7, %8, %cst_8 {dimension_numbers = #tpu.dot_dimension_numbers<[1], [0], [0], [1], [0, 0, 1, 1], [], []>} : vector<16x32xf32>, vector<32x16xf32>, vector<16x16xf32> -> vector<16x16xf32>
    %c0_9 = arith.constant 0 : index
    %c0_10 = arith.constant 0 : index
    %10 = vector.load %arg5[%c0_9, %c0_10] : memref<1x16xf32, #tpu.memory_space<vmem>>, vector<1x16xf32>
    %11 = vector.broadcast %10 : vector<1x16xf32> to vector<16x16xf32>
    %12 = arith.addf %9, %11 : vector<16x16xf32>
    %cst_11 = arith.constant 0.000000e+00 : f32
    %13 = vector.broadcast %cst_11 : f32 to vector<16x16xf32>
    %14 = arith.maximumf %12, %13 : vector<16x16xf32>
    %c0_12 = arith.constant 0 : index
    %c0_13 = arith.constant 0 : index
    %15 = vector.load %arg6[%c0_12, %c0_13] : memref<16x8xf32, #tpu.memory_space<vmem>>, vector<16x8xf32>
    %cst_14 = arith.constant dense<0.000000e+00> : vector<16x8xf32>
    %16 = tpu.matmul %14, %15, %cst_14 {dimension_numbers = #tpu.dot_dimension_numbers<[1], [0], [0], [1], [0, 0, 1, 1], [], []>} : vector<16x16xf32>, vector<16x8xf32>, vector<16x8xf32> -> vector<16x8xf32>
    %c0_15 = arith.constant 0 : index
    %c0_16 = arith.constant 0 : index
    %17 = vector.load %arg7[%c0_15, %c0_16] : memref<1x8xf32, #tpu.memory_space<vmem>>, vector<1x8xf32>
    %18 = vector.broadcast %17 : vector<1x8xf32> to vector<16x8xf32>
    %19 = arith.addf %16, %18 : vector<16x8xf32>
    %cst_17 = arith.constant 0.000000e+00 : f32
    %20 = vector.broadcast %cst_17 : f32 to vector<16x8xf32>
    %21 = arith.maximumf %19, %20 : vector<16x8xf32>
    %c0_18 = arith.constant 0 : index
    %c0_19 = arith.constant 0 : index
    %22 = vector.load %arg8[%c0_18, %c0_19] : memref<8x4xf32, #tpu.memory_space<vmem>>, vector<8x4xf32>
    %cst_20 = arith.constant dense<0.000000e+00> : vector<16x4xf32>
    %23 = tpu.matmul %21, %22, %cst_20 {dimension_numbers = #tpu.dot_dimension_numbers<[1], [0], [0], [1], [0, 0, 1, 1], [], []>} : vector<16x8xf32>, vector<8x4xf32>, vector<16x4xf32> -> vector<16x4xf32>
    %c0_21 = arith.constant 0 : index
    %c0_22 = arith.constant 0 : index
    %24 = memref.load %arg9[%c0_21, %c0_22] : memref<1x1xf32, #tpu.memory_space<smem>>
    %25 = vector.broadcast %24 : f32 to vector<16x4xf32>
    %26 = arith.addf %23, %25 : vector<16x4xf32>
    %c0_23 = arith.constant 0 : index
    %c0_24 = arith.constant 0 : index
    %27 = vector.load %arg10[%c0_23, %c0_24] : memref<16x4xf32, #tpu.memory_space<vmem>>, vector<16x4xf32>
    tpu.vector_store %arg10[%c0_23, %c0_24], %26 {strides = array<i32>} : memref<16x4xf32, #tpu.memory_space<vmem>>, vector<16x4xf32>,
    return
  }
  func.func @transform_0(%arg0: i32) -> (i32, i32) {
    %c0_i32 = arith.constant 0 : i32
    %c0_i32_0 = arith.constant 0 : i32
    return %arg0, %c0_i32 : i32, i32
  }
  func.func @transform_1(%arg0: i32) -> (i32, i32) {
    %c0_i32 = arith.constant 0 : i32
    %c0_i32_0 = arith.constant 0 : i32
    %c0_i32_1 = arith.constant 0 : i32
    return %c0_i32, %c0_i32_0 : i32, i32
  }
  func.func @transform_2(%arg0: i32) -> (i32, i32) {
    %c0_i32 = arith.constant 0 : i32
    %c0_i32_0 = arith.constant 0 : i32
    %c0_i32_1 = arith.constant 0 : i32
    return %c0_i32, %c0_i32_0 : i32, i32
  }
  func.func @transform_3(%arg0: i32) -> (i32, i32) {
    %c0_i32 = arith.constant 0 : i32
    %c0_i32_0 = arith.constant 0 : i32
    %c0_i32_1 = arith.constant 0 : i32
    return %c0_i32, %c0_i32_0 : i32, i32
  }
  func.func @transform_4(%arg0: i32) -> (i32, i32) {
    %c0_i32 = arith.constant 0 : i32
    %c0_i32_0 = arith.constant 0 : i32
    %c0_i32_1 = arith.constant 0 : i32
    return %c0_i32, %c0_i32_0 : i32, i32
  }
  func.func @transform_5(%arg0: i32) -> (i32, i32) {
    %c0_i32 = arith.constant 0 : i32
    %c0_i32_0 = arith.constant 0 : i32
    %c0_i32_1 = arith.constant 0 : i32
    return %c0_i32, %c0_i32_0 : i32, i32
  }
  func.func @transform_6(%arg0: i32) -> (i32, i32) {
    %c0_i32 = arith.constant 0 : i32
    %c0_i32_0 = arith.constant 0 : i32
    %c0_i32_1 = arith.constant 0 : i32
    return %c0_i32, %c0_i32_0 : i32, i32
  }
  func.func @transform_7(%arg0: i32) -> (i32, i32) {
    %c0_i32 = arith.constant 0 : i32
    %c0_i32_0 = arith.constant 0 : i32
    %c0_i32_1 = arith.constant 0 : i32
    return %c0_i32, %c0_i32_0 : i32, i32
  }
  func.func @transform_8(%arg0: i32) -> (i32, i32) {
    %c0_i32 = arith.constant 0 : i32
    %c0_i32_0 = arith.constant 0 : i32
    %c0_i32_1 = arith.constant 0 : i32
    return %c0_i32, %c0_i32_0 : i32, i32
  }
  func.func @transform_9(%arg0: i32) -> (i32, i32) {
    %c0_i32 = arith.constant 0 : i32
    %c0_i32_0 = arith.constant 0 : i32
    return %arg0, %c0_i32 : i32, i32
  }
}

</mosaic_0001>

<llo_original>
// kernel: tpu_custom_call.1
$region0: #{tpu_custom_call.1}
  #allocation0 [shape = 'u32[]', space=smem, size = 0x4, offset = 0x4, fixed_abs, tag = 'smem constant byte address 0x4 - core index']
  #allocation1 [shape = 'u32[144,128]{1,0:T(1,128)}', space=vmem, size = 0x12000, scoped, tag = 'internal scratch']
  #allocation2 [shape = 'f32[1,1]{1,0:T(1,128)S(6)}', space=smem, size = 0x200, scoped, tag = 'scoped memory for tpu_custom_call.1']
  %s0 = inlined_call_operand.vmem [shape: f32[80,128], index: 0, kind: input, shape index: {}]
  %s1 = inlined_call_operand.vmem [shape: f32[128,32], index: 1, kind: input, shape index: {}]
  %s2 = inlined_call_operand.vmem [shape: f32[1,32], index: 2, kind: input, shape index: {}]
  %s3 = inlined_call_operand.vmem [shape: f32[32,16], index: 3, kind: input, shape index: {}]
  %s4 = inlined_call_operand.vmem [shape: f32[1,16], index: 4, kind: input, shape index: {}]
  %s5 = inlined_call_operand.vmem [shape: f32[16,8], index: 5, kind: input, shape index: {}]
  %s6 = inlined_call_operand.vmem [shape: f32[1,8], index: 6, kind: input, shape index: {}]
  %s7 = inlined_call_operand.vmem [shape: f32[8,4], index: 7, kind: input, shape index: {}]
  %s8 = inlined_call_operand.<no memory space> [shape: f32[1,1], index: 8, kind: input, shape index: {}]
  %s9 = inlined_call_operand.vmem [shape: f32[80,4], index: 9, kind: output, shape index: {}]
  %s10 = sld [smem:[#allocation0]]
  $region69: #{tpu_custom_call.1} parent=0
    _
  %s12 = ssub.s32 1, %s10
  %s13 = scalar_select 0, %s12, %s10
  %14 = sst [smem:[#allocation2]] %s8
  loop: start=0, step=1, limit=7
  $region2: #{tpu_custom_call.1} parent=0 // loop_pre_header
    _
  $region3: #{tpu_custom_call.1} parent=0 // loop_header
    %s16 = sphi 0, %s20
    %p17 = scmp.ge.s32.totalorder %s16, 7
    %s26 = sphi 0, %s28
    %s29 = sphi 0, %s26
    %s30 = sphi 0, %s29
    %s46 = sphi 0, %s30
    %s50 = sphi 0, %s50
    %s52 = sphi 0, %s50
    %s53 = sphi 0, %s52
    %s67 = sphi 0, %s53
    %s71 = sphi 0, %s71
    %s73 = sphi 0, %s71
    %s74 = sphi 0, %s73
    %s88 = sphi 0, %s74
    %s92 = sphi 0, %s92
    %s94 = sphi 0, %s92
    %s95 = sphi 0, %s94
    %s109 = sphi 0, %s95
    %s113 = sphi 0, %s113
    %s115 = sphi 0, %s113
    %s116 = sphi 0, %s115
    %s130 = sphi 0, %s116
    %s134 = sphi 0, %s134
    %s136 = sphi 0, %s134
    %s137 = sphi 0, %s136
    %s151 = sphi 0, %s137
    %s155 = sphi 0, %s155
    %s157 = sphi 0, %s155
    %s158 = sphi 0, %s157
    %s172 = sphi 0, %s158
    %s176 = sphi 0, %s176
    %s178 = sphi 0, %s176
    %s179 = sphi 0, %s178
    %s193 = sphi 0, %s179
    %s197 = sphi 0, %s197
    %s199 = sphi 0, %s197
    %s200 = sphi 0, %s199
    %s214 = sphi 0, %s200
    %s220 = sphi 0, %s222
    %s223 = sphi 0, %s220
    %s224 = sphi 0, %s223
    %s240 = sphi 0, %s224
  $region4: #{tpu_custom_call.1} parent=0 // loop_header_branch
    %19 = sbr.rel (%p17) target = $region8
  $region5: #{tpu_custom_call.1} parent=0 // loop_body
    %s21 = ssub.s32 %s16, 1
    %s22 = ssub.s32 %s16, 2
    %s23 = sadd.s32 %s16, 1
    %s24 = ssub.s32 %s16, %s23
    %p25 = scmp.eq.s32.totalorder %s24, 0
    %s27 = sadd.s32 %s26, 1
    %s28 = scalar_select %p25, %s26, %s27
    %p31 = pneg %p25
    %p32 = scmp.eq.s32.totalorder %s16, 4
    %p33 = por %p31, %p32
    %p34 = scmp.ne.s32.totalorder %s26, %s29
    %p35 = scmp.eq.s32.totalorder %s16, 0
    %p36 = por %p34, %p35
    %p37 = scmp.ne.s32.totalorder %s26, %s29
    %p38 = scmp.eq.s32.totalorder %s21, 4
    %p39 = por %p37, %p38
    %p40 = scmp.ne.s32.totalorder %s29, %s30
    %p41 = scmp.eq.s32.totalorder %s21, 0
    %p42 = por %p40, %p41
    %p43 = scmp.ne.s32.totalorder %s29, %s30
    %p44 = scmp.eq.s32.totalorder %s22, 4
    %p45 = por %p43, %p44
    %p47 = scmp.ne.s32.totalorder %s30, %s46
    %p48 = scmp.eq.s32.totalorder %s22, 0
    %p49 = por %p47, %p48
    %s51 = sadd.s32 %s50, 1
    %p54 = scmp.eq.s32.totalorder %s16, 4
    %p55 = scmp.ne.s32.totalorder %s50, %s52
    %p56 = scmp.eq.s32.totalorder %s16, 0
    %p57 = por %p55, %p56
    %p58 = scmp.ne.s32.totalorder %s50, %s52
    %p59 = scmp.eq.s32.totalorder %s21, 4
    %p60 = por %p58, %p59
    %p61 = scmp.ne.s32.totalorder %s52, %s53
    %p62 = scmp.eq.s32.totalorder %s21, 0
    %p63 = por %p61, %p62
    %p64 = scmp.ne.s32.totalorder %s52, %s53
    %p65 = scmp.eq.s32.totalorder %s22, 4
    %p66 = por %p64, %p65
    %p68 = scmp.ne.s32.totalorder %s53, %s67
    %p69 = scmp.eq.s32.totalorder %s22, 0
    %p70 = por %p68, %p69
    %s72 = sadd.s32 %s71, 1
    %p75 = scmp.eq.s32.totalorder %s16, 4
    %p76 = scmp.ne.s32.totalorder %s71, %s73
    %p77 = scmp.eq.s32.totalorder %s16, 0
    %p78 = por %p76, %p77
    %p79 = scmp.ne.s32.totalorder %s71, %s73
    %p80 = scmp.eq.s32.totalorder %s21, 4
    %p81 = por %p79, %p80
    %p82 = scmp.ne.s32.totalorder %s73, %s74
    %p83 = scmp.eq.s32.totalorder %s21, 0
    %p84 = por %p82, %p83
    %p85 = scmp.ne.s32.totalorder %s73, %s74
    %p86 = scmp.eq.s32.totalorder %s22, 4
    %p87 = por %p85, %p86
    %p89 = scmp.ne.s32.totalorder %s74, %s88
    %p90 = scmp.eq.s32.totalorder %s22, 0
    %p91 = por %p89, %p90
    %s93 = sadd.s32 %s92, 1
    %p96 = scmp.eq.s32.totalorder %s16, 4
    %p97 = scmp.ne.s32.totalorder %s92, %s94
    %p98 = scmp.eq.s32.totalorder %s16, 0
    %p99 = por %p97, %p98
    %p100 = scmp.ne.s32.totalorder %s92, %s94
    %p101 = scmp.eq.s32.totalorder %s21, 4
    %p102 = por %p100, %p101
    %p103 = scmp.ne.s32.totalorder %s94, %s95
    %p104 = scmp.eq.s32.totalorder %s21, 0
    %p105 = por %p103, %p104
    %p106 = scmp.ne.s32.totalorder %s94, %s95
    %p107 = scmp.eq.s32.totalorder %s22, 4
    %p108 = por %p106, %p107
    %p110 = scmp.ne.s32.totalorder %s95, %s109
    %p111 = scmp.eq.s32.totalorder %s22, 0
    %p112 = por %p110, %p111
    %s114 = sadd.s32 %s113, 1
    %p117 = scmp.eq.s32.totalorder %s16, 4
    %p118 = scmp.ne.s32.totalorder %s113, %s115
    %p119 = scmp.eq.s32.totalorder %s16, 0
    %p120 = por %p118, %p119
    %p121 = scmp.ne.s32.totalorder %s113, %s115
    %p122 = scmp.eq.s32.totalorder %s21, 4
    %p123 = por %p121, %p122
    %p124 = scmp.ne.s32.totalorder %s115, %s116
    %p125 = scmp.eq.s32.totalorder %s21, 0
    %p126 = por %p124, %p125
    %p127 = scmp.ne.s32.totalorder %s115, %s116
    %p128 = scmp.eq.s32.totalorder %s22, 4
    %p129 = por %p127, %p128
    %p131 = scmp.ne.s32.totalorder %s116, %s130
    %p132 = scmp.eq.s32.totalorder %s22, 0
    %p133 = por %p131, %p132
    %s135 = sadd.s32 %s134, 1
    %p138 = scmp.eq.s32.totalorder %s16, 4
    %p139 = scmp.ne.s32.totalorder %s134, %s136
    %p140 = scmp.eq.s32.totalorder %s16, 0
    %p141 = por %p139, %p140
    %p142 = scmp.ne.s32.totalorder %s134, %s136
    %p143 = scmp.eq.s32.totalorder %s21, 4
    %p144 = por %p142, %p143
    %p145 = scmp.ne.s32.totalorder %s136, %s137
    %p146 = scmp.eq.s32.totalorder %s21, 0
    %p147 = por %p145, %p146
    %p148 = scmp.ne.s32.totalorder %s136, %s137
    %p149 = scmp.eq.s32.totalorder %s22, 4
    %p150 = por %p148, %p149
    %p152 = scmp.ne.s32.totalorder %s137, %s151
    %p153 = scmp.eq.s32.totalorder %s22, 0
    %p154 = por %p152, %p153
    %s156 = sadd.s32 %s155, 1
    %p159 = scmp.eq.s32.totalorder %s16, 4
    %p160 = scmp.ne.s32.totalorder %s155, %s157
    %p161 = scmp.eq.s32.totalorder %s16, 0
    %p162 = por %p160, %p161
    %p163 = scmp.ne.s32.totalorder %s155, %s157
    %p164 = scmp.eq.s32.totalorder %s21, 4
    %p165 = por %p163, %p164
    %p166 = scmp.ne.s32.totalorder %s157, %s158
    %p167 = scmp.eq.s32.totalorder %s21, 0
    %p168 = por %p166, %p167
    %p169 = scmp.ne.s32.totalorder %s157, %s158
    %p170 = scmp.eq.s32.totalorder %s22, 4
    %p171 = por %p169, %p170
    %p173 = scmp.ne.s32.totalorder %s158, %s172
    %p174 = scmp.eq.s32.totalorder %s22, 0
    %p175 = por %p173, %p174
    %s177 = sadd.s32 %s176, 1
    %p180 = scmp.eq.s32.totalorder %s16, 4
    %p181 = scmp.ne.s32.totalorder %s176, %s178
    %p182 = scmp.eq.s32.totalorder %s16, 0
    %p183 = por %p181, %p182
    %p184 = scmp.ne.s32.totalorder %s176, %s178
    %p185 = scmp.eq.s32.totalorder %s21, 4
    %p186 = por %p184, %p185
    %p187 = scmp.ne.s32.totalorder %s178, %s179
    %p188 = scmp.eq.s32.totalorder %s21, 0
    %p189 = por %p187, %p188
    %p190 = scmp.ne.s32.totalorder %s178, %s179
    %p191 = scmp.eq.s32.totalorder %s22, 4
    %p192 = por %p190, %p191
    %p194 = scmp.ne.s32.totalorder %s179, %s193
    %p195 = scmp.eq.s32.totalorder %s22, 0
    %p196 = por %p194, %p195
    %s198 = sadd.s32 %s197, 1
    %p201 = scmp.eq.s32.totalorder %s16, 4
    %p202 = scmp.ne.s32.totalorder %s197, %s199
    %p203 = scmp.eq.s32.totalorder %s16, 0
    %p204 = por %p202, %p203
    %p205 = scmp.ne.s32.totalorder %s197, %s199
    %p206 = scmp.eq.s32.totalorder %s21, 4
    %p207 = por %p205, %p206
    %p208 = scmp.ne.s32.totalorder %s199, %s200
    %p209 = scmp.eq.s32.totalorder %s21, 0
    %p210 = por %p208, %p209
    %p211 = scmp.ne.s32.totalorder %s199, %s200
    %p212 = scmp.eq.s32.totalorder %s22, 4
    %p213 = por %p211, %p212
    %p215 = scmp.ne.s32.totalorder %s200, %s214
    %p216 = scmp.eq.s32.totalorder %s22, 0
    %p217 = por %p215, %p216
    %s218 = ssub.s32 %s16, %s23
    %p219 = scmp.eq.s32.totalorder %s218, 0
    %s221 = sadd.s32 %s220, 1
    %s222 = scalar_select %p219, %s220, %s221
    %p225 = pneg %p219
    %p226 = scmp.eq.s32.totalorder %s16, 4
    %p227 = por %p225, %p226
    %p228 = scmp.ne.s32.totalorder %s220, %s223
    %p229 = scmp.eq.s32.totalorder %s16, 0
    %p230 = por %p228, %p229
    %p231 = scmp.ne.s32.totalorder %s220, %s223
    %p232 = scmp.eq.s32.totalorder %s21, 4
    %p233 = por %p231, %p232
    %p234 = scmp.ne.s32.totalorder %s223, %s224
    %p235 = scmp.eq.s32.totalorder %s21, 0
    %p236 = por %p234, %p235
    %p237 = scmp.ne.s32.totalorder %s223, %s224
    %p238 = scmp.eq.s32.totalorder %s22, 4
    %p239 = por %p237, %p238
    %p241 = scmp.ne.s32.totalorder %s224, %s240
    %p242 = scmp.eq.s32.totalorder %s22, 0
    %p243 = por %p241, %p242
    %p244 = scmp.le.s32.totalorder 1, %s16
    %p245 = scmp.lt.s32.totalorder %s16, 6
    %p246 = pnand %p244, %p245
    %p247 = pneg %p246
    // Predicated region
    $region9: #{tpu_custom_call.1} parent=5 // pred_check
      _
    $region10: #{tpu_custom_call.1} parent=5 // pred_check_branch
      %249 = sbr.rel (%p246) target = $region12
    $region11: #{tpu_custom_call.1} parent=5 // pred_region
      %s250 = ssub.s32 %s16, 1
      // Predicated region
      $region13: #{tpu_custom_call.1} parent=11 // pred_check
        %p251 = pneg %p63
      $region14: #{tpu_custom_call.1} parent=11 // pred_check_branch
        %253 = sbr.rel (%p251) target = $region16
      $region15: #{tpu_custom_call.1} parent=11 // pred_region
        _
      $region16: #{tpu_custom_call.1} parent=11 // pred_fallthru
        _
      // Predicated region
      $region17: #{tpu_custom_call.1} parent=11 // pred_check
        %p254 = pneg %p84
      $region18: #{tpu_custom_call.1} parent=11 // pred_check_branch
        %256 = sbr.rel (%p254) target = $region20
      $region19: #{tpu_custom_call.1} parent=11 // pred_region
        _
      $region20: #{tpu_custom_call.1} parent=11 // pred_fallthru
        _
      // Predicated region
      $region21: #{tpu_custom_call.1} parent=11 // pred_check
        %p257 = pneg %p105
      $region22: #{tpu_custom_call.1} parent=11 // pred_check_branch
        %259 = sbr.rel (%p257) target = $region24
      $region23: #{tpu_custom_call.1} parent=11 // pred_region
        _
      $region24: #{tpu_custom_call.1} parent=11 // pred_fallthru
        _
      // Predicated region
      $region25: #{tpu_custom_call.1} parent=11 // pred_check
        %p260 = pneg %p126
      $region26: #{tpu_custom_call.1} parent=11 // pred_check_branch
        %262 = sbr.rel (%p260) target = $region28
      $region27: #{tpu_custom_call.1} parent=11 // pred_region
        _
      $region28: #{tpu_custom_call.1} parent=11 // pred_fallthru
        _
      // Predicated region
      $region29: #{tpu_custom_call.1} parent=11 // pred_check
        %p263 = pneg %p147
      $region30: #{tpu_custom_call.1} parent=11 // pred_check_branch
        %265 = sbr.rel (%p263) target = $region32
      $region31: #{tpu_custom_call.1} parent=11 // pred_region
        _
      $region32: #{tpu_custom_call.1} parent=11 // pred_fallthru
        _
      // Predicated region
      $region33: #{tpu_custom_call.1} parent=11 // pred_check
        %p266 = pneg %p168
      $region34: #{tpu_custom_call.1} parent=11 // pred_check_branch
        %268 = sbr.rel (%p266) target = $region36
      $region35: #{tpu_custom_call.1} parent=11 // pred_region
        _
      $region36: #{tpu_custom_call.1} parent=11 // pred_fallthru
        _
      // Predicated region
      $region37: #{tpu_custom_call.1} parent=11 // pred_check
        %p269 = pneg %p189
      $region38: #{tpu_custom_call.1} parent=11 // pred_check_branch
        %271 = sbr.rel (%p269) target = $region40
      $region39: #{tpu_custom_call.1} parent=11 // pred_region
        _
      $region40: #{tpu_custom_call.1} parent=11 // pred_fallthru
        _
      // Predicated region
      $region41: #{tpu_custom_call.1} parent=11 // pred_check
        %p272 = pneg %p210
      $region42: #{tpu_custom_call.1} parent=11 // pred_check_branch
        %274 = sbr.rel (%p272) target = $region44
      $region43: #{tpu_custom_call.1} parent=11 // pred_region
        _
      $region44: #{tpu_custom_call.1} parent=11 // pred_fallthru
        _
    $region12: #{tpu_custom_call.1} parent=5 // pred_fallthru
      _
    %p275 = scmp.lt.s32.totalorder %s16, 5
    // Predicated region
    $region45: #{tpu_custom_call.1} parent=5 // pred_check
      %p276 = pneg %p275
    $region46: #{tpu_custom_call.1} parent=5 // pred_check_branch
      %278 = sbr.rel (%p276) target = $region48
    $region47: #{tpu_custom_call.1} parent=5 // pred_region
      // Predicated region
      $region49: #{tpu_custom_call.1} parent=47 // pred_check
        %p279 = pneg %p36
      $region50: #{tpu_custom_call.1} parent=47 // pred_check_branch
        %281 = sbr.rel (%p279) target = $region52
      $region51: #{tpu_custom_call.1} parent=47 // pred_region
        %s282 = smul.u32 2, %s16
        %p283 = scmp.lt.s32.totalorder %s282, 9
        %s284 = scalar_select %p283, %s282, 9
        %s285 = smul.addr %s284, 8
        %s286 = scalar_lea.vmem %s0, %s285
        %s287 = smul.u32 2, %s16
      $region52: #{tpu_custom_call.1} parent=47 // pred_fallthru
        _
    $region48: #{tpu_custom_call.1} parent=5 // pred_fallthru
      _
    %p288 = scmp.le.s32.totalorder 1, %s16
    %p289 = scmp.lt.s32.totalorder %s16, 6
    %p290 = pnand %p288, %p289
    %p291 = pneg %p290
    // Predicated region
    $region53: #{tpu_custom_call.1} parent=5 // pred_check
      _
    $region54: #{tpu_custom_call.1} parent=5 // pred_check_branch
      %293 = sbr.rel (%p290) target = $region56
    $region55: #{tpu_custom_call.1} parent=5 // pred_region
      %s294 = ssub.s32 %s16, 1
      %s295 = smul.u32 2, %s21
      %p296 = scmp.lt.s32.totalorder %s295, 9
      %s297 = scalar_select %p296, %s295, 9
      %s298 = smul.addr %s297, 8
      %s299 = scalar_lea.vmem %s0, %s298
      %p300 = pneg %p42
      %p301 = pneg %p39
      %p302 = pneg %p63
      %p303 = pneg %p60
      %p304 = pneg %p84
      %p305 = pneg %p81
      %p306 = pneg %p105
      %p307 = pneg %p102
      %p308 = pneg %p126
      %p309 = pneg %p123
      %p310 = pneg %p147
      %p311 = pneg %p144
      %p312 = pneg %p168
      %p313 = pneg %p165
      %p314 = pneg %p189
      %p315 = pneg %p186
      %p316 = pneg %p210
      %p317 = pneg %p207
      %p318 = pneg %p236
      %p319 = pneg %p233
      %s320 = smul.u32 2, %s21
      %p321 = scmp.lt.s32.totalorder %s320, 9
      %s322 = scalar_select %p321, %s320, 9
      %s323 = smul.addr %s322, 8
      %s324 = scalar_lea.vmem %s9, %s323
      %s325 = smul.u32 2, %s21
      %p326 = scmp.lt.s32.totalorder %s325, 9
      %s327 = scalar_select %p326, %s325, 9
      %s328 = smul.addr %s327, 8
      %s329 = scalar_lea.vmem %s0, %s328
      %s330 = smul.u32 2, %s21
      %s331 = smul.u32 2, %s21
      %p332 = scmp.lt.s32.totalorder %s331, 9
      %s333 = scalar_select %p332, %s331, 9
      %s334 = smul.addr %s333, 8
      %s335 = scalar_lea.vmem %s9, %s334
      %s336 = smul.u32 2, %s21
      %v337 = vld [vmem:[%s329] sm:$0xff]
      %v338 = vld [vmem:[%s329 + $0x8] sm:$0xff]
      %v339 = vld [vmem:[%s1] sm:$0xff]
      %v340 = vld [vmem:[%s1 + $0x8] sm:$0xff]
      %v341 = vld [vmem:[%s1 + $0x10] sm:$0xff]
      %v342 = vld [vmem:[%s1 + $0x18] sm:$0xff]
      %v343 = vld [vmem:[%s1 + $0x20] sm:$0xff]
      %v344 = vld [vmem:[%s1 + $0x28] sm:$0xff]
      %v345 = vld [vmem:[%s1 + $0x30] sm:$0xff]
      %v346 = vld [vmem:[%s1 + $0x38] sm:$0xff]
      %v347 = vld [vmem:[%s1 + $0x40] sm:$0xff]
      %v348 = vld [vmem:[%s1 + $0x48] sm:$0xff]
      %v349 = vld [vmem:[%s1 + $0x50] sm:$0xff]
      %v350 = vld [vmem:[%s1 + $0x58] sm:$0xff]
      %v351 = vld [vmem:[%s1 + $0x60] sm:$0xff]
      %v352 = vld [vmem:[%s1 + $0x68] sm:$0xff]
      %v353 = vld [vmem:[%s1 + $0x70] sm:$0xff]
      %v354 = vld [vmem:[%s1 + $0x78] sm:$0xff]
      %v355 = vld [vmem:[%s2] sm:$0x1]
      %v357 = vlaneseq
      %v358 = vshrl.u32 %v357, 7
      %v359 = vsub.s32 0, %v358
      %v360 = vrot.slane %v355, %v359
      %362 = vmatprep.subr.mxu0 0.0
      %363 = vmatpush1.msra.mxu0 %v354
      %364 = vmatprep.subr.mxu0 0.0
      %365 = vmatpush1.msra.mxu0 %v353
      %366 = vmatprep.subr.mxu0 0.0
      %367 = vmatpush1.msra.mxu0 %v352
      %368 = vmatprep.subr.mxu0 0.0
      %369 = vmatpush1.msra.mxu0 %v351
      %370 = vmatprep.subr.mxu0 0.0
      %371 = vmatpush1.msra.mxu0 %v350
      %372 = vmatprep.subr.mxu0 0.0
      %373 = vmatpush1.msra.mxu0 %v349
      %374 = vmatprep.subr.mxu0 0.0
      %375 = vmatpush1.msra.mxu0 %v348
      %376 = vmatprep.subr.mxu0 0.0
      %377 = vmatpush1.msra.mxu0 %v347
      %378 = vmatprep.subr.mxu0 0.0
      %379 = vmatpush1.msra.mxu0 %v346
      %380 = vmatprep.subr.mxu0 0.0
      %381 = vmatpush1.msra.mxu0 %v345
      %382 = vmatprep.subr.mxu0 0.0
      %383 = vmatpush1.msra.mxu0 %v344
      %384 = vmatprep.subr.mxu0 0.0
      %385 = vmatpush1.msra.mxu0 %v343
      %386 = vmatprep.subr.mxu0 0.0
      %387 = vmatpush1.msra.mxu0 %v342
      %388 = vmatprep.subr.mxu0 0.0
      %389 = vmatpush1.msra.mxu0 %v341
      %390 = vmatprep.subr.mxu0 0.0
      %391 = vmatpush1.msra.mxu0 %v340
      %392 = vmatprep.subr.mxu0 0.0
      %393 = vmatpush1.msra.mxu0 %v339
      %394 = vmatprep.subr.mxu0 0.0
      %395 = vmatpush2.msra.mxu0 0.0
      %396 = vmatprep.subr.mxu0 0.0
      %397 = vmatpush2.msra.mxu0 0.0
      %398 = vmatprep.subr.mxu0 0.0
      %399 = vmatpush2.msra.mxu0 0.0
      %400 = vmatprep.subr.mxu0 0.0
      %401 = vmatpush2.msra.mxu0 0.0
      %402 = vmatprep.subr.mxu0 0.0
      %403 = vmatpush2.msra.mxu0 0.0
      %404 = vmatprep.subr.mxu0 0.0
      %405 = vmatpush2.msra.mxu0 0.0
      %406 = vmatprep.subr.mxu0 0.0
      %407 = vmatpush2.msra.mxu0 0.0
      %408 = vmatprep.subr.mxu0 0.0
      %409 = vmatpush2.msra.mxu0 0.0
      %410 = vmatprep.subr.mxu0 0.0
      %411 = vmatpush2.msra.mxu0 0.0
      %412 = vmatprep.subr.mxu0 0.0
      %413 = vmatpush2.msra.mxu0 0.0
      %414 = vmatprep.subr.mxu0 0.0
      %415 = vmatpush2.msra.mxu0 0.0
      %416 = vmatprep.subr.mxu0 0.0
      %417 = vmatpush2.msra.mxu0 0.0
      %418 = vmatprep.subr.mxu0 0.0
      %419 = vmatpush2.msra.mxu0 0.0
      %420 = vmatprep.subr.mxu0 0.0
      %421 = vmatpush2.msra.mxu0 0.0
      %422 = vmatprep.subr.mxu0 0.0
      %423 = vmatpush2.msra.mxu0 0.0
      %424 = vmatprep.subr.mxu0 0.0
      %425 = vmatpush2.msra.mxu0 0.0
      %426 = vmatprep.mubr.f32.mxu0 0.0
      %427 = vmatmul.mubr.f32.gmra.mxu0 %v337
      %v428 = vpop.f32.mrf.mxu0
      %v429 = vadd.f32 %v360, %v428
      %v430 = vpop.f32.mrf.mxu0
      %431 = vmatprep.mubr.f32.mxu0 0.0
      %432 = vmatmul.mubr.f32.gmra.mxu0 %v338
      %v433 = vpop.f32.mrf.mxu0
      %v434 = vadd.f32 %v360, %v433
      %v435 = vpop.f32.mrf.mxu0
      %436 = vdwg.mxu0
      %v437 = vmax.f32 %v429, 0.0
      %v438 = vmax.f32 %v434, 0.0
      %v439 = vld [vmem:[%s3] sm:$0xff]
      %v440 = vld [vmem:[%s3 + $0x8] sm:$0xff]
      %v441 = vld [vmem:[%s3 + $0x10] sm:$0xff]
      %v442 = vld [vmem:[%s3 + $0x18] sm:$0xff]
      %v443 = vld [vmem:[%s4] sm:$0x1]
      %v445 = vlaneseq
      %v446 = vshrl.u32 %v445, 7
      %v447 = vsub.s32 0, %v446
      %v448 = vrot.slane %v443, %v447
      %vm450 = vcmask 261120
      %v452 = vsel %vm450, %v437, 0
      %v455 = vsel %vm450, %v438, 0
      %457 = vmatprep.subr.mxu0 0.0
      %458 = vmatpush1.msra.mxu0 0.0
      %459 = vmatprep.subr.mxu0 0.0
      %460 = vmatpush1.msra.mxu0 0.0
      %461 = vmatprep.subr.mxu0 0.0
      %462 = vmatpush1.msra.mxu0 0.0
      %463 = vmatprep.subr.mxu0 0.0
      %464 = vmatpush1.msra.mxu0 0.0
      %465 = vmatprep.subr.mxu0 0.0
      %466 = vmatpush1.msra.mxu0 0.0
      %467 = vmatprep.subr.mxu0 0.0
      %468 = vmatpush1.msra.mxu0 0.0
      %469 = vmatprep.subr.mxu0 0.0
      %470 = vmatpush1.msra.mxu0 0.0
      %471 = vmatprep.subr.mxu0 0.0
      %472 = vmatpush1.msra.mxu0 0.0
      %473 = vmatprep.subr.mxu0 0.0
      %474 = vmatpush1.msra.mxu0 0.0
      %475 = vmatprep.subr.mxu0 0.0
      %476 = vmatpush1.msra.mxu0 0.0
      %477 = vmatprep.subr.mxu0 0.0
      %478 = vmatpush1.msra.mxu0 0.0
      %479 = vmatprep.subr.mxu0 0.0
      %480 = vmatpush1.msra.mxu0 0.0
      %481 = vmatprep.subr.mxu0 0.0
      %482 = vmatpush1.msra.mxu0 %v442
      %483 = vmatprep.subr.mxu0 0.0
      %484 = vmatpush1.msra.mxu0 %v441
      %485 = vmatprep.subr.mxu0 0.0
      %486 = vmatpush1.msra.mxu0 %v440
      %487 = vmatprep.subr.mxu0 0.0
      %488 = vmatpush1.msra.mxu0 %v439
      %489 = vmatprep.subr.mxu0 0.0
      %490 = vmatpush2.msra.mxu0 0.0
      %491 = vmatprep.subr.mxu0 0.0
      %492 = vmatpush2.msra.mxu0 0.0
      %493 = vmatprep.subr.mxu0 0.0
      %494 = vmatpush2.msra.mxu0 0.0
      %495 = vmatprep.subr.mxu0 0.0
      %496 = vmatpush2.msra.mxu0 0.0
      %497 = vmatprep.subr.mxu0 0.0
      %498 = vmatpush2.msra.mxu0 0.0
      %499 = vmatprep.subr.mxu0 0.0
      %500 = vmatpush2.msra.mxu0 0.0
      %501 = vmatprep.subr.mxu0 0.0
      %502 = vmatpush2.msra.mxu0 0.0
      %503 = vmatprep.subr.mxu0 0.0
      %504 = vmatpush2.msra.mxu0 0.0
      %505 = vmatprep.subr.mxu0 0.0
      %506 = vmatpush2.msra.mxu0 0.0
      %507 = vmatprep.subr.mxu0 0.0
      %508 = vmatpush2.msra.mxu0 0.0
      %509 = vmatprep.subr.mxu0 0.0
      %510 = vmatpush2.msra.mxu0 0.0
      %511 = vmatprep.subr.mxu0 0.0
      %512 = vmatpush2.msra.mxu0 0.0
      %513 = vmatprep.subr.mxu0 0.0
      %514 = vmatpush2.msra.mxu0 0.0
      %515 = vmatprep.subr.mxu0 0.0
      %516 = vmatpush2.msra.mxu0 0.0
      %517 = vmatprep.subr.mxu0 0.0
      %518 = vmatpush2.msra.mxu0 0.0
      %519 = vmatprep.subr.mxu0 0.0
      %520 = vmatpush2.msra.mxu0 0.0
      %521 = vmatprep.mubr.f32.mxu0 0.0
      %522 = vmatmul.mubr.f32.gmra.mxu0 %v452
      %v523 = vpop.f32.mrf.mxu0
      %v524 = vadd.f32 %v448, %v523
      %v525 = vpop.f32.mrf.mxu0
      %526 = vmatprep.mubr.f32.mxu0 0.0
      %527 = vmatmul.mubr.f32.gmra.mxu0 %v455
      %v528 = vpop.f32.mrf.mxu0
      %v529 = vadd.f32 %v448, %v528
      %v530 = vpop.f32.mrf.mxu0
      %531 = vdwg.mxu0
      %v532 = vmax.f32 %v524, 0.0
      %v533 = vmax.f32 %v529, 0.0
      %v534 = vld [vmem:[%s5] sm:$0xff]
      %v535 = vld [vmem:[%s5 + $0x8] sm:$0xff]
      %v536 = vld [vmem:[%s6] sm:$0x1]
      %v538 = vlaneseq
      %v539 = vshrl.u32 %v538, 7
      %v540 = vsub.s32 0, %v539
      %v541 = vrot.slane %v536, %v540
      %vm543 = vcmask 130048
      %v545 = vsel %vm543, %v532, 0
      %v548 = vsel %vm543, %v533, 0
      %550 = vmatprep.subr.mxu0 0.0
      %551 = vmatpush1.msra.mxu0 0.0
      %552 = vmatprep.subr.mxu0 0.0
      %553 = vmatpush1.msra.mxu0 0.0
      %554 = vmatprep.subr.mxu0 0.0
      %555 = vmatpush1.msra.mxu0 0.0
      %556 = vmatprep.subr.mxu0 0.0
      %557 = vmatpush1.msra.mxu0 0.0
      %558 = vmatprep.subr.mxu0 0.0
      %559 = vmatpush1.msra.mxu0 0.0
      %560 = vmatprep.subr.mxu0 0.0
      %561 = vmatpush1.msra.mxu0 0.0
      %562 = vmatprep.subr.mxu0 0.0
      %563 = vmatpush1.msra.mxu0 0.0
      %564 = vmatprep.subr.mxu0 0.0
      %565 = vmatpush1.msra.mxu0 0.0
      %566 = vmatprep.subr.mxu0 0.0
      %567 = vmatpush1.msra.mxu0 0.0
      %568 = vmatprep.subr.mxu0 0.0
      %569 = vmatpush1.msra.mxu0 0.0
      %570 = vmatprep.subr.mxu0 0.0
      %571 = vmatpush1.msra.mxu0 0.0
      %572 = vmatprep.subr.mxu0 0.0
      %573 = vmatpush1.msra.mxu0 0.0
      %574 = vmatprep.subr.mxu0 0.0
      %575 = vmatpush1.msra.mxu0 0.0
      %576 = vmatprep.subr.mxu0 0.0
      %577 = vmatpush1.msra.mxu0 0.0
      %578 = vmatprep.subr.mxu0 0.0
      %579 = vmatpush1.msra.mxu0 %v535
      %580 = vmatprep.subr.mxu0 0.0
      %581 = vmatpush1.msra.mxu0 %v534
      %582 = vmatprep.subr.mxu0 0.0
      %583 = vmatpush2.msra.mxu0 0.0
      %584 = vmatprep.subr.mxu0 0.0
      %585 = vmatpush2.msra.mxu0 0.0
      %586 = vmatprep.subr.mxu0 0.0
      %587 = vmatpush2.msra.mxu0 0.0
      %588 = vmatprep.subr.mxu0 0.0
      %589 = vmatpush2.msra.mxu0 0.0
      %590 = vmatprep.subr.mxu0 0.0
      %591 = vmatpush2.msra.mxu0 0.0
      %592 = vmatprep.subr.mxu0 0.0
      %593 = vmatpush2.msra.mxu0 0.0
      %594 = vmatprep.subr.mxu0 0.0
      %595 = vmatpush2.msra.mxu0 0.0
      %596 = vmatprep.subr.mxu0 0.0
      %597 = vmatpush2.msra.mxu0 0.0
      %598 = vmatprep.subr.mxu0 0.0
      %599 = vmatpush2.msra.mxu0 0.0
      %600 = vmatprep.subr.mxu0 0.0
      %601 = vmatpush2.msra.mxu0 0.0
      %602 = vmatprep.subr.mxu0 0.0
      %603 = vmatpush2.msra.mxu0 0.0
      %604 = vmatprep.subr.mxu0 0.0
      %605 = vmatpush2.msra.mxu0 0.0
      %606 = vmatprep.subr.mxu0 0.0
      %607 = vmatpush2.msra.mxu0 0.0
      %608 = vmatprep.subr.mxu0 0.0
      %609 = vmatpush2.msra.mxu0 0.0
      %610 = vmatprep.subr.mxu0 0.0
      %611 = vmatpush2.msra.mxu0 0.0
      %612 = vmatprep.subr.mxu0 0.0
      %613 = vmatpush2.msra.mxu0 0.0
      %614 = vmatprep.mubr.f32.mxu0 0.0
      %615 = vmatmul.mubr.f32.gmra.mxu0 %v545
      %v616 = vpop.f32.mrf.mxu0
      %v617 = vadd.f32 %v541, %v616
      %v618 = vpop.f32.mrf.mxu0
      %619 = vmatprep.mubr.f32.mxu0 0.0
      %620 = vmatmul.mubr.f32.gmra.mxu0 %v548
      %v621 = vpop.f32.mrf.mxu0
      %v622 = vadd.f32 %v541, %v621
      %v623 = vpop.f32.mrf.mxu0
      %624 = vdwg.mxu0
      %v625 = vmax.f32 %v617, 0.0
      %v626 = vmax.f32 %v622, 0.0
      %v627 = vld [vmem:[%s7] sm:$0xff]
      %s628 = sld [smem:[#allocation2]]
      %v629 = vstv %s628
      %vm630 = vcmask 64512
      %v632 = vsel %vm630, %v625, 0
      %v635 = vsel %vm630, %v626, 0
      %637 = vmatprep.subr.mxu0 0.0
      %638 = vmatpush1.msra.mxu0 0.0
      %639 = vmatprep.subr.mxu0 0.0
      %640 = vmatpush1.msra.mxu0 0.0
      %641 = vmatprep.subr.mxu0 0.0
      %642 = vmatpush1.msra.mxu0 0.0
      %643 = vmatprep.subr.mxu0 0.0
      %644 = vmatpush1.msra.mxu0 0.0
      %645 = vmatprep.subr.mxu0 0.0
      %646 = vmatpush1.msra.mxu0 0.0
      %647 = vmatprep.subr.mxu0 0.0
      %648 = vmatpush1.msra.mxu0 0.0
      %649 = vmatprep.subr.mxu0 0.0
      %650 = vmatpush1.msra.mxu0 0.0
      %651 = vmatprep.subr.mxu0 0.0
      %652 = vmatpush1.msra.mxu0 0.0
      %653 = vmatprep.subr.mxu0 0.0
      %654 = vmatpush1.msra.mxu0 0.0
      %655 = vmatprep.subr.mxu0 0.0
      %656 = vmatpush1.msra.mxu0 0.0
      %657 = vmatprep.subr.mxu0 0.0
      %658 = vmatpush1.msra.mxu0 0.0
      %659 = vmatprep.subr.mxu0 0.0
      %660 = vmatpush1.msra.mxu0 0.0
      %661 = vmatprep.subr.mxu0 0.0
      %662 = vmatpush1.msra.mxu0 0.0
      %663 = vmatprep.subr.mxu0 0.0
      %664 = vmatpush1.msra.mxu0 0.0
      %665 = vmatprep.subr.mxu0 0.0
      %666 = vmatpush1.msra.mxu0 0.0
      %667 = vmatprep.subr.mxu0 0.0
      %668 = vmatpush1.msra.mxu0 %v627
      %669 = vmatprep.subr.mxu0 0.0
      %670 = vmatpush2.msra.mxu0 0.0
      %671 = vmatprep.subr.mxu0 0.0
      %672 = vmatpush2.msra.mxu0 0.0
      %673 = vmatprep.subr.mxu0 0.0
      %674 = vmatpush2.msra.mxu0 0.0
      %675 = vmatprep.subr.mxu0 0.0
      %676 = vmatpush2.msra.mxu0 0.0
      %677 = vmatprep.subr.mxu0 0.0
      %678 = vmatpush2.msra.mxu0 0.0
      %679 = vmatprep.subr.mxu0 0.0
      %680 = vmatpush2.msra.mxu0 0.0
      %681 = vmatprep.subr.mxu0 0.0
      %682 = vmatpush2.msra.mxu0 0.0
      %683 = vmatprep.subr.mxu0 0.0
      %684 = vmatpush2.msra.mxu0 0.0
      %685 = vmatprep.subr.mxu0 0.0
      %686 = vmatpush2.msra.mxu0 0.0
      %687 = vmatprep.subr.mxu0 0.0
      %688 = vmatpush2.msra.mxu0 0.0
      %689 = vmatprep.subr.mxu0 0.0
      %690 = vmatpush2.msra.mxu0 0.0
      %691 = vmatprep.subr.mxu0 0.0
      %692 = vmatpush2.msra.mxu0 0.0
      %693 = vmatprep.subr.mxu0 0.0
      %694 = vmatpush2.msra.mxu0 0.0
      %695 = vmatprep.subr.mxu0 0.0
      %696 = vmatpush2.msra.mxu0 0.0
      %697 = vmatprep.subr.mxu0 0.0
      %698 = vmatpush2.msra.mxu0 0.0
      %699 = vmatprep.subr.mxu0 0.0
      %700 = vmatpush2.msra.mxu0 0.0
      %701 = vmatprep.mubr.f32.mxu0 0.0
      %702 = vmatmul.mubr.f32.gmra.mxu0 %v632
      %v703 = vpop.f32.mrf.mxu0
      %v704 = vadd.f32 %v629, %v703
      %v705 = vpop.f32.mrf.mxu0
      %706 = vmatprep.mubr.f32.mxu0 0.0
      %707 = vmatmul.mubr.f32.gmra.mxu0 %v635
      %v708 = vpop.f32.mrf.mxu0
      %v709 = vadd.f32 %v629, %v708
      %v710 = vpop.f32.mrf.mxu0
      %711 = vdwg.mxu0
      %vm712 = vcmask 31744
      %713 = vst.msk [vmem:[%s335] sm:$0xff] %vm712, %v704
      %714 = vst.msk [vmem:[%s335 + $0x8] sm:$0xff] %vm712, %v709
      %s715 = smul.u32 2, %s21
      %p716 = scmp.lt.s32.totalorder %s715, 9
      %s717 = scalar_select %p716, %s715, 9
      %s718 = smul.addr %s717, 8
      %s719 = scalar_lea.vmem %s9, %s718
      // Predicated region
      $region57: #{tpu_custom_call.1} parent=55 // pred_check
        %p720 = pneg %p233
      $region58: #{tpu_custom_call.1} parent=55 // pred_check_branch
        %722 = sbr.rel (%p720) target = $region60
      $region59: #{tpu_custom_call.1} parent=55 // pred_region
        %s723 = smul.u32 2, %s21
      $region60: #{tpu_custom_call.1} parent=55 // pred_fallthru
        _
    $region56: #{tpu_custom_call.1} parent=5 // pred_fallthru
      _
    %p724 = scmp.le.s32.totalorder 2, %s16
    // Predicated region
    $region61: #{tpu_custom_call.1} parent=5 // pred_check
      %p725 = pneg %p724
    $region62: #{tpu_custom_call.1} parent=5 // pred_check_branch
      %727 = sbr.rel (%p725) target = $region64
    $region63: #{tpu_custom_call.1} parent=5 // pred_region
      %s728 = ssub.s32 %s16, 2
      // Predicated region
      $region65: #{tpu_custom_call.1} parent=63 // pred_check
        %p729 = pneg %p239
      $region66: #{tpu_custom_call.1} parent=63 // pred_check_branch
        %731 = sbr.rel (%p729) target = $region68
      $region67: #{tpu_custom_call.1} parent=63 // pred_region
        %s732 = smul.u32 2, %s22
        %p733 = scmp.lt.s32.totalorder %s732, 9
        %s734 = scalar_select %p733, %s732, 9
        %s735 = smul.addr %s734, 8
        %s736 = scalar_lea.vmem %s9, %s735
      $region68: #{tpu_custom_call.1} parent=63 // pred_fallthru
        _
    $region64: #{tpu_custom_call.1} parent=5 // pred_fallthru
      _
  $region6: #{tpu_custom_call.1} parent=0 // loop_footer
    %s20 = sadd.s32 1, %s16
  $region7: #{tpu_custom_call.1} parent=0 // loop_footer_branch
    %15 = sbr.rel target = $region3
  $region8: #{tpu_custom_call.1} parent=0 // loop_exit
    _

</llo_original>
